<compile_context>
chip_gen: v6e
topology: v6e:2x2x1
jax: 0.10.0
libtpu: 0.0.40
codegen_flags: <defaults>
</compile_context>

<pallas_src>
import functools

import numpy as np
import jax
import jax.numpy as jnp
from jax import lax
from jax.experimental import pallas as pl
from jax.experimental.pallas import tpu as pltpu


def _round_up(x, m):
    return (x + m - 1) // m * m


@functools.lru_cache(maxsize=None)
def _roll_matches_numpy():
    """Detect pltpu.roll's rotation convention with a tiny probe kernel.

    Returns True if pltpu.roll(x, s, axis) == jnp.roll(x, s, axis), i.e.
    out[p] = in[(p - s) % L].  The conv tap shifts below adapt either way.
    """
    def probe(x_ref, o_ref):
        o_ref[...] = pltpu.roll(x_ref[...], 1, axis=1)

    x = jnp.arange(8 * 128, dtype=jnp.float32).reshape(8, 128)
    y = jax.device_get(
        pl.pallas_call(
            probe, out_shape=jax.ShapeDtypeStruct((8, 128), jnp.float32))(x))
    return bool(y[0, 0] == 127.0)


def _same_padding_masks(H, W):
    """(9, 1, H*W) f32 validity masks, one per 3x3 tap (tap t = dy*3 + dx)."""
    L = H * W
    p = np.arange(L)
    row, col = p // W, p % W
    m = np.zeros((9, 1, L), np.float32)
    for t in range(9):
        dy, dx = t // 3 - 1, t % 3 - 1
        m[t, 0] = ((row + dy >= 0) & (row + dy < H) &
                   (col + dx >= 0) & (col + dx < W)).astype(np.float32)
    return jnp.asarray(m)


def _decoder_kernel(x_ref, masks_ref, w1_ref, b1_ref, w2_ref, b2_ref, o_ref,
                    *, H, W, roll_np, mm_dtype):
    """Fused conv3x3+ReLU -> conv3x3+ReLU for one batch element.

    x_ref    : (1, CinPad, H*W)     flattened NCHW input (channels padded)
    masks_ref: (9, 1, H*W)          per-tap "same padding" validity masks
    w1_ref   : (HidPad, 9*CinPad)   layer-1 weights, tap-major / channel-minor
    b1_ref   : (HidPad, 1)
    w2_ref   : (OutPad, 9*HidPad)   layer-2 weights
    b2_ref   : (OutPad, 1)
    o_ref    : (1, OutPad, H*W)     flattened NCHW output (lane-dense)
    """
    L = H * W

    def conv3x3_relu(x, w, b):
        # Build the im2col stack (9*C, L) with XLU rolls + padding masks
        # (no slice+reshape relayouts, no padded halo in HBM).
        parts = []
        for t in range(9):
            dy, dx = t // 3 - 1, t % 3 - 1
            off = dy * W + dx                      # flat-index tap offset
            if off == 0:
                shifted = x
            else:
                # want shifted[:, p] == x[:, p + off]; OOB lanes masked below.
                shift = (-off) % L if roll_np else off % L
                shifted = pltpu.roll(x, shift, axis=1)
            if dy != 0 or dx != 0:
                shifted = shifted * masks_ref[t]   # (1, L) broadcast
            parts.append(shifted)
        xstack = jnp.concatenate(parts, axis=0)    # (9*C, L)
        # One MXU matmul per layer: (CoutPad, 9*C) @ (9*C, L) -> (CoutPad, L).
        acc = jnp.dot(w.astype(mm_dtype), xstack.astype(mm_dtype),
                      preferred_element_type=jnp.float32)
        return jnp.maximum(acc + b, 0.0)           # bias + ReLU, one VPU pass

    x = x_ref[0]                                   # (CinPad, L)
    h = conv3x3_relu(x, w1_ref[...], b1_ref[...])  # hidden stays on-chip
    y = conv3x3_relu(h, w2_ref[...], b2_ref[...])  # (OutPad, L)
    o_ref[0] = y.astype(o_ref.dtype)


def _pack_conv(w_oihw, b, cin_pad, cout_pad):
    """PyTorch-layout (cout, cin, 3, 3) weights -> (cout_pad, 9*cin_pad) matmul
    matrix with columns ordered tap-major / channel-minor to match the kernel's
    im2col stack, plus bias as a (cout_pad, 1) column."""
    cout, cin, kh, kw = w_oihw.shape
    w = jnp.transpose(w_oihw, (0, 2, 3, 1)).reshape(cout, kh * kw, cin)
    w = jnp.pad(w, ((0, cout_pad - cout), (0, 0), (0, cin_pad - cin)))
    w = w.reshape(cout_pad, kh * kw * cin_pad)
    b = jnp.pad(b, (0, cout_pad - cout)).reshape(cout_pad, 1)
    return w, b


def decoder_forward(params, x_nchw, *, matmul_dtype=jnp.float32):
    """Matches Decoder.forward: conv1(3x3, same, ReLU) -> conv2(3x3, same, ReLU)."""
    N, cin, H, W = x_nchw.shape
    hid = params["b1"].shape[0]
    cout = params["b2"].shape[0]
    L = H * W
    cin_p, hid_p, out_p = (_round_up(c, 8) for c in (cin, hid, cout))

    # Flatten NCHW -> (N, C, H*W) (pure reshape, no data movement) and pad the
    # channel dim to the sublane tile.  No spatial padding: "same" padding is
    # handled in-kernel via the tap masks.
    x = x_nchw.reshape(N, cin, L)
    if cin_p != cin:
        x = jnp.pad(x, ((0, 0), (0, cin_p - cin), (0, 0)))

    masks = _same_padding_masks(H, W)
    w1, b1 = _pack_conv(params["w1"], params["b1"], cin_p, hid_p)
    w2, b2 = _pack_conv(params["w2"], params["b2"], hid_p, out_p)

    kernel = functools.partial(_decoder_kernel, H=H, W=W,
                               roll_np=_roll_matches_numpy(),
                               mm_dtype=matmul_dtype)

    y = pl.pallas_call(
        kernel,
        out_shape=jax.ShapeDtypeStruct((N, out_p, L), jnp.float32),
        grid_spec=pltpu.PrefetchScalarGridSpec(
            num_scalar_prefetch=0,
            grid=(N,),
            in_specs=[
                pl.BlockSpec((1, cin_p, L), lambda n: (n, 0, 0)),
                pl.BlockSpec((9, 1, L), lambda n: (0, 0, 0)),
                pl.BlockSpec((hid_p, 9 * cin_p), lambda n: (0, 0)),
                pl.BlockSpec((hid_p, 1), lambda n: (0, 0)),
                pl.BlockSpec((out_p, 9 * hid_p), lambda n: (0, 0)),
                pl.BlockSpec((out_p, 1), lambda n: (0, 0)),
            ],
            out_specs=pl.BlockSpec((1, out_p, L), lambda n: (n, 0, 0)),
        ),
        compiler_params=pltpu.CompilerParams(
            dimension_semantics=("parallel",)),
    )(x, masks, w1, b1, w2, b2)

    # Drop channel padding; the kernel layout is already flattened NCHW.
    return y[:, :cout, :].reshape(N, cout, H, W)


def init_decoder_params(key, in_dim, hid_dim, out_dim):
    """Deterministic kaiming-normal (fan_out, relu) init like the PyTorch
    module, stored in the PyTorch OIHW layout."""
    k1, k2, k3, k4 = jax.random.split(key, 4)

    def kaiming_w(k, cin, cout):
        std = (2.0 / (cout * 3 * 3)) ** 0.5      # fan_out mode, relu gain
        return jax.random.normal(k, (cout, cin, 3, 3), dtype=jnp.float32) * std

    def conv_bias(k, cin, cout):
        bound = 1.0 / (cin * 3 * 3) ** 0.5
        return jax.random.uniform(k, (cout,), minval=-bound, maxval=bound,
                                  dtype=jnp.float32)

    return {"w1": kaiming_w(k1, in_dim, hid_dim),
            "b1": conv_bias(k2, in_dim, hid_dim),
            "w2": kaiming_w(k3, hid_dim, out_dim),
            "b2": conv_bias(k4, hid_dim, out_dim)}


def _reference_forward(params, x_nchw):
    """Pure-JAX reference (lax conv) for correctness checking."""
    def conv(x, w, b):
        y = lax.conv_general_dilated(
            x, w, window_strides=(1, 1), padding=((1, 1), (1, 1)),
            dimension_numbers=("NCHW", "OIHW", "NCHW"))
        return jnp.maximum(y + b.reshape(1, -1, 1, 1), 0.0)

    x = conv(x_nchw, params["w1"], params["b1"])
    return conv(x, params["w2"], params["b2"])


if __name__ == "__main__":
    key = jax.random.PRNGKey(0)
    k_params, k_x = jax.random.split(key)

    N, in_dim, H, W = 2, 4, 16, 16
    hid_dim, out_dim = 8, 4

    params = init_decoder_params(k_params, in_dim, hid_dim, out_dim)
    x = jax.random.normal(k_x, (N, in_dim, H, W), dtype=jnp.float32)

    out = jax.block_until_ready(decoder_forward(params, x))
    ref = jax.block_until_ready(_reference_forward(params, x))

    assert out.shape == (N, out_dim, H, W)
    assert jnp.allclose(out, ref, atol=1e-4, rtol=1e-4), (
        "max abs err = %g" % float(jnp.max(jnp.abs(out - ref))))

    print("KERNEL_OK")
</pallas_src>

<mosaic_0001>
module attributes {stable_mosaic.version = 11 : i64} {
  func.func @probe(%arg0: memref<8x128xf32, #tpu.memory_space<vmem>>, %arg1: memref<8x128xf32, #tpu.memory_space<vmem>>) attributes {dimension_semantics = [], scalar_prefetch = 0 : i64, scratch_operands = 0 : i64, tpu.core_type = #tpu.core_type<tc>} {
    %c0 = arith.constant 0 : index
    %c0_0 = arith.constant 0 : index
    %0 = vector.load %arg0[%c0, %c0_0] : memref<8x128xf32, #tpu.memory_space<vmem>>, vector<8x128xf32>
    %c1_i32 = arith.constant 1 : i32
    %1 = tpu.dynamic_rotate %0 by %c1_i32 dim 1 : vector<8x128xf32>, i32 -> vector<8x128xf32>
    %c0_1 = arith.constant 0 : index
    %c0_2 = arith.constant 0 : index
    %2 = vector.load %arg1[%c0_1, %c0_2] : memref<8x128xf32, #tpu.memory_space<vmem>>, vector<8x128xf32>
    tpu.vector_store %arg1[%c0_1, %c0_2], %1 {strides = array<i32>} : memref<8x128xf32, #tpu.memory_space<vmem>>, vector<8x128xf32>,
    return
  }
}

</mosaic_0001>

<llo_original>
// kernel: tpu_custom_call.1
$region0: #{tpu_custom_call.1}
  #allocation0 [shape = 'u32[]', space=smem, size = 0x4, offset = 0x4, fixed_abs, tag = 'smem constant byte address 0x4 - core index']
  #allocation1 [shape = 'u32[144,128]{1,0:T(1,128)}', space=vmem, size = 0x12000, scoped, tag = 'internal scratch']
  %s0 = inlined_call_operand.hbm [shape: f32[8,128], index: 0, kind: input, shape index: {}]
  %s1 = inlined_call_operand.hbm [shape: f32[8,128], index: 1, kind: output, shape index: {}]
  %s2 = sld [smem:[#allocation0]]
  $region18: #{tpu_custom_call.1} parent=0
    _
  %s4 = ssub.s32 1, %s2
  %s5 = scalar_select 0, %s4, %s2
  $region1: #{tpu_custom_call.1} parent=0
    #allocation2 [shape = 'u8[4096]{0}', space=vmem, size = 0x1000, scoped, tag = 'input window, operand 0, single buffered']
    #allocation3 [shape = 's32[1]{0}', space=sflag, size = 0x4, scoped, tag = 'scoped memory for tpu_custom_call.1']
    #allocation4 [shape = 's32[1]{0}', space=sflag, size = 0x4, scoped, tag = 'scoped memory for tpu_custom_call.1']
    #allocation5 [shape = 'u8[4096]{0}', space=vmem, size = 0x1000, scoped, tag = 'output window, operand 0, single buffered']
    %6 = vsyncpa [#allocation3], 0
    %7 = vsyncpa [#allocation4], 0
    // Predicated region
    $region2: #{tpu_custom_call.1} parent=1 // pred_check
      _
    $region3: #{tpu_custom_call.1} parent=1 // pred_check_branch
      %9 = sbr.rel (0) target = $region5
    $region4: #{tpu_custom_call.1} parent=1 // pred_region
      %s11 = ssub.s32 128, 128
      %12 = vsyncadd [#allocation3], %s11
      %s14 = sshll.u32 [#allocation2], 4
      %s15 = int_to_ptr.vmem [resolvable:$true] %s14
      %17 = dma.hbm_to_vmem [thread:$0]  %s0, 128, %s15, [#allocation3]
    $region5: #{tpu_custom_call.1} parent=1 // pred_fallthru
      _
    // Predicated region
    $region6: #{tpu_custom_call.1} parent=1 // pred_check
      _
    $region7: #{tpu_custom_call.1} parent=1 // pred_check_branch
      %19 = sbr.rel (0) target = $region9
    $region8: #{tpu_custom_call.1} parent=1 // pred_region
      %20 = dma.done [#allocation3], 128
    $region9: #{tpu_custom_call.1} parent=1 // pred_fallthru
      _
    %v21 = vld [vmem:[#allocation2] sm:$0xff]
    %22 = vrot.lane.b32.xlu0 %v21, 1
    %v23 = vpop.permute.xlu0 %22
    %24 = vst [vmem:[#allocation5] sm:$0xff] %v23
    // Predicated region
    $region10: #{tpu_custom_call.1} parent=1 // pred_check
      _
    $region11: #{tpu_custom_call.1} parent=1 // pred_check_branch
      %26 = sbr.rel (0) target = $region13
    $region12: #{tpu_custom_call.1} parent=1 // pred_region
      %s28 = ssub.s32 128, 128
      %29 = vsyncadd [#allocation4], %s28
      %s31 = sshll.u32 [#allocation5], 4
      %s32 = int_to_ptr.vmem [resolvable:$true] %s31
      %34 = dma.vmem_to_hbm [thread:$0]  %s32, 128, %s1, [#allocation4]
    $region13: #{tpu_custom_call.1} parent=1 // pred_fallthru
      _
    // Predicated region
    $region14: #{tpu_custom_call.1} parent=1 // pred_check
      _
    $region15: #{tpu_custom_call.1} parent=1 // pred_check_branch
      %36 = sbr.rel (0) target = $region17
    $region16: #{tpu_custom_call.1} parent=1 // pred_region
      %37 = dma.done [#allocation4], 128
    $region17: #{tpu_custom_call.1} parent=1 // pred_fallthru
      _
    %38 = vsyncpa [#allocation3], 1
    %39 = vsyncpa [#allocation4], 1

</llo_original>
